<compile_context>
chip_gen: v6e
topology: v6e:2x2x1
jax: 0.10.0
libtpu: 0.0.40
codegen_flags: <defaults>
</compile_context>

<pallas_src>
import math
import functools

import jax
import jax.numpy as jnp
from jax.experimental import pallas as pl
from jax.experimental.pallas import tpu as pltpu

SQRT2PI = math.sqrt(2.0 * math.pi)
LANES = 128


def _spline_pdf_kernel(prm_ref, x_ref, out_ref, *, nblocks, nknots):
    """prm_ref: (nblocks*2*K, TR, 128); x_ref/out_ref: (TR, 128).

    Implements, per row: init_spline_block (softplus increments + prefix sum,
    knot derivatives), SplineBlock.forward and SplineBlock.dt fused, product of
    block derivatives, then the Gaussian base pdf.
    """
    K = nknots
    f = x_ref[...]                                   # (TR, 128) value pushed through blocks
    dt_prod = jnp.ones_like(f)                       # running product of block derivatives
    one = jnp.ones_like(f)

    for ib in range(nblocks):
        base = ib * 2 * K
        # raw params, fully unrolled over knots; each (TR, 128)
        pt = [prm_ref[base + k] for k in range(K)]
        py = [prm_ref[base + K + k] for k in range(K)]

        # monotone knot positions: unrolled prefix sum of 0.001 + softplus increments
        t = [pt[0]]
        y = [py[0]]
        for k in range(1, K):
            t.append(t[-1] + 0.001 + jax.nn.softplus(pt[k]))
            y.append(y[-1] + 0.001 + jax.nn.softplus(py[k]))

        # knot derivatives: d = [1, di_0..di_{K-3}, 1]
        df = [(y[k + 1] - y[k]) * pl.reciprocal(t[k + 1] - t[k]) for k in range(K - 1)]
        d = [one]
        for k in range(K - 2):
            d.append(df[k] * df[k + 1] * (t[k + 2] - t[k]) * pl.reciprocal(y[k + 2] - y[k]))
        d.append(one)

        # bucket index i = sum_k (f > t_k); boundary handling via clamp
        i = jnp.zeros(f.shape, jnp.int32)
        for k in range(K):
            i = i + (f > t[k]).astype(jnp.int32)
        eq0 = i == 0
        eq1 = i == K
        k0 = jnp.clip(i - 1, 0, K - 2)               # k1 = k0 + 1

        # gather knot values with an unrolled compare+select scan (pure VPU, no XLU)
        t0, t1 = t[0], t[1]
        y0, y1 = y[0], y[1]
        d0, d1 = d[0], d[1]
        for k in range(1, K - 1):
            sel = k0 == k
            t0 = jnp.where(sel, t[k], t0)
            t1 = jnp.where(sel, t[k + 1], t1)
            y0 = jnp.where(sel, y[k], y0)
            y1 = jnp.where(sel, y[k + 1], y1)
            d0 = jnp.where(sel, d[k], d0)
            d1 = jnp.where(sel, d[k + 1], d1)

        delta_t = t1 - t0
        delta_y = y1 - y0
        inv_dt = pl.reciprocal(delta_t)
        s = delta_y * inv_dt
        e = (f - t0) * inv_dt
        ome = 1.0 - e
        b = d1 + d0 - 2.0 * s

        # interior rational-quadratic value
        n0 = delta_y * (s * e * e + d0 * e * ome)
        n1 = s + b * e * ome
        inv_n1 = pl.reciprocal(n1)
        p_int = y0 + n0 * inv_n1

        # linear extrapolation outside the knot range
        p_lo = d0 * f + (y0 - d0 * t0)
        p_hi = d1 * f + (y1 - d1 * t1)
        p = jnp.where(eq0, p_lo, jnp.where(eq1, p_hi, p_int))

        # interior derivative, reusing inv_n1 (div1 = n1^2)
        div0 = s * s * (d1 * e * e + 2.0 * s * e * ome + d0 * ome * ome)
        dt_blk = jnp.where(eq0, d0, jnp.where(eq1, d1, div0 * inv_n1 * inv_n1))

        dt_prod = dt_prod * dt_blk
        f = p

    out_ref[...] = jnp.exp(-0.5 * f * f) * dt_prod * (1.0 / SQRT2PI)


def flow_pdf_pallas(parameters, f, *, lead_time, nblocks=1, nknots=6, tile_rows=8):
    """parameters: (B, lead_time*nblocks*2*nknots); f: (B, lead_time) -> pdf (B, lead_time)."""
    B, L = f.shape
    assert L == lead_time
    K = nknots
    N = B * L
    P = nblocks * 2 * K

    # Model.set_parameters glue + layout transpose: rows -> (sublane, lane) axes.
    prm = parameters.reshape(B, L, nblocks, 2, K).reshape(N, P)   # (N, nblocks*2*K)
    prm_T = prm.T                                                  # (P, N)
    x = f.reshape(N)

    # pad rows to a multiple of tile_rows * 128 (zeros are numerically safe here)
    chunk = tile_rows * LANES
    Np = ((N + chunk - 1) // chunk) * chunk
    pad = Np - N
    if pad:
        prm_T = jnp.pad(prm_T, ((0, 0), (0, pad)))
        x = jnp.pad(x, (0, pad))
    NR = Np // LANES

    prm3 = prm_T.reshape(P, NR, LANES)
    x2 = x.reshape(NR, LANES)

    kernel = functools.partial(_spline_pdf_kernel, nblocks=nblocks, nknots=nknots)
    out = pl.pallas_call(
        kernel,
        out_shape=jax.ShapeDtypeStruct((NR, LANES), jnp.float32),
        grid_spec=pltpu.PrefetchScalarGridSpec(
            num_scalar_prefetch=0,
            grid=(NR // tile_rows,),
            in_specs=[
                pl.BlockSpec((P, tile_rows, LANES), lambda n: (0, n, 0)),
                pl.BlockSpec((tile_rows, LANES), lambda n: (n, 0)),
            ],
            out_specs=pl.BlockSpec((tile_rows, LANES), lambda n: (n, 0)),
        ),
        compiler_params=pltpu.CompilerParams(dimension_semantics=("parallel",)),
    )(prm3, x2)
    return out.reshape(Np)[:N].reshape(B, L)


def flow_pdf_ref(parameters, f, *, lead_time, nblocks=1, nknots=6):
    """Pure-JAX reference mirroring the PyTorch Model.pdf path (correctness check)."""
    B, L = f.shape
    K = nknots
    prm = parameters.reshape(B, lead_time, nblocks, 2, K)
    prm_t = prm[:, :, :, 0].reshape(B * lead_time, nblocks, K)
    prm_y = prm[:, :, :, 1].reshape(B * lead_time, nblocks, K)
    x = f.reshape(B * lead_time, 1)
    fcur = x
    dt_prod = jnp.ones_like(x)
    N = x.shape[0]
    col = jnp.arange(K)[None, :]
    for ib in range(nblocks):
        pt = prm_t[:, ib, :]
        py = prm_y[:, ib, :]
        t = jnp.cumsum(jnp.concatenate([pt[:, :1], 0.001 + jax.nn.softplus(pt[:, 1:])], -1), -1)
        y = jnp.cumsum(jnp.concatenate([py[:, :1], 0.001 + jax.nn.softplus(py[:, 1:])], -1), -1)
        h = t[:, 1:] - t[:, :-1]
        df = (y[:, 1:] - y[:, :-1]) / h
        di = df[:, :-1] * df[:, 1:] / ((y[:, 2:] - y[:, :-2]) / (t[:, 2:] - t[:, :-2]))
        ones = jnp.ones((N, 1), t.dtype)
        d = jnp.concatenate([ones, di, ones], -1)
        i = jnp.sum((fcur > t).astype(jnp.int32), -1, keepdims=True)
        eq0, eq1 = i == 0, i == K
        k0 = jnp.where(eq0, 0, jnp.where(eq1, K - 2, i - 1))
        k1 = jnp.where(eq0, 1, jnp.where(eq1, K - 1, i))
        oh0 = (col == k0).astype(t.dtype)
        oh1 = (col == k1).astype(t.dtype)
        t0, t1 = (t * oh0).sum(-1, keepdims=True), (t * oh1).sum(-1, keepdims=True)
        y0, y1 = (y * oh0).sum(-1, keepdims=True), (y * oh1).sum(-1, keepdims=True)
        d0, d1 = (d * oh0).sum(-1, keepdims=True), (d * oh1).sum(-1, keepdims=True)
        dt_, dy_ = t1 - t0, y1 - y0
        s = dy_ / dt_
        e = (fcur - t0) / dt_
        b = d1 + d0 - 2.0 * s
        p_int = y0 + dy_ * (s * e * e + d0 * e * (1 - e)) / (s + b * e * (1 - e))
        p = jnp.where(eq0, d0 * fcur + (y0 - d0 * t0),
                      jnp.where(eq1, d1 * fcur + (y1 - d1 * t1), p_int))
        div0 = s * s * (d1 * e * e + 2 * s * e * (1 - e) + d0 * (1 - e) ** 2)
        div1 = (s + b * e * (1 - e)) ** 2
        dtv = jnp.where(eq0, d0, jnp.where(eq1, d1, div0 / div1))
        dt_prod = dt_prod * dtv
        fcur = p
    return (jnp.exp(-0.5 * fcur * fcur) * dt_prod / SQRT2PI).reshape(B, L)


if __name__ == "__main__":
    # N = B * lead_time = 2048 rows -> 2 grid steps of 8x128 rows each
    B, lead_time, nblocks, nknots = 4, 512, 1, 6
    nparams = lead_time * nblocks * 2 * nknots

    key = jax.random.PRNGKey(0)
    kp, kf = jax.random.split(key)
    parameters = jax.random.normal(kp, (B, nparams), dtype=jnp.float32)
    f = jax.random.normal(kf, (B, lead_time), dtype=jnp.float32)

    out = flow_pdf_pallas(parameters, f, lead_time=lead_time,
                          nblocks=nblocks, nknots=nknots, tile_rows=8)
    out = jax.block_until_ready(out)

    ref = flow_pdf_ref(parameters, f, lead_time=lead_time,
                       nblocks=nblocks, nknots=nknots)
    assert out.shape == (B, lead_time)
    assert jnp.allclose(out, ref, rtol=1e-4, atol=1e-5), (out, ref)
    print("KERNEL_OK")
</pallas_src>

<mosaic_0001>
module attributes {stable_mosaic.version = 11 : i64} {
  func.func @_spline_pdf_kernel(%arg0: i32, %arg1: memref<12x8x128xf32, #tpu.memory_space<vmem>>, %arg2: memref<8x128xf32, #tpu.memory_space<vmem>>, %arg3: memref<8x128xf32, #tpu.memory_space<vmem>>) attributes {dimension_semantics = [#tpu.dimension_semantics<parallel>], iteration_bounds = array<i64: 2>, scalar_prefetch = 0 : i64, scratch_operands = 0 : i64, tpu.core_type = #tpu.core_type<tc>, window_params = [{transform_indices = @transform_0, window_bounds = array<i64: 12, 8, 128>}, {transform_indices = @transform_1, window_bounds = array<i64: 8, 128>}, {transform_indices = @transform_2, window_bounds = array<i64: 8, 128>}]} {
    %c0 = arith.constant 0 : index
    %c0_0 = arith.constant 0 : index
    %0 = vector.load %arg2[%c0, %c0_0] : memref<8x128xf32, #tpu.memory_space<vmem>>, vector<8x128xf32>
    %cst = arith.constant 1.000000e+00 : f32
    %1 = vector.broadcast %cst : f32 to vector<8x128xf32>
    %cst_1 = arith.constant 1.000000e+00 : f32
    %2 = vector.broadcast %cst_1 : f32 to vector<8x128xf32>
    %c0_2 = arith.constant 0 : index
    %c0_3 = arith.constant 0 : index
    %c0_4 = arith.constant 0 : index
    %3 = vector.load %arg1[%c0_2, %c0_3, %c0_4] : memref<12x8x128xf32, #tpu.memory_space<vmem>>, vector<1x8x128xf32>
    %4 = vector.shape_cast %3 : vector<1x8x128xf32> to vector<8x128xf32>
    %c1 = arith.constant 1 : index
    %c0_5 = arith.constant 0 : index
    %c0_6 = arith.constant 0 : index
    %5 = vector.load %arg1[%c1, %c0_5, %c0_6] : memref<12x8x128xf32, #tpu.memory_space<vmem>>, vector<1x8x128xf32>
    %6 = vector.shape_cast %5 : vector<1x8x128xf32> to vector<8x128xf32>
    %c2 = arith.constant 2 : index
    %c0_7 = arith.constant 0 : index
    %c0_8 = arith.constant 0 : index
    %7 = vector.load %arg1[%c2, %c0_7, %c0_8] : memref<12x8x128xf32, #tpu.memory_space<vmem>>, vector<1x8x128xf32>
    %8 = vector.shape_cast %7 : vector<1x8x128xf32> to vector<8x128xf32>
    %c3 = arith.constant 3 : index
    %c0_9 = arith.constant 0 : index
    %c0_10 = arith.constant 0 : index
    %9 = vector.load %arg1[%c3, %c0_9, %c0_10] : memref<12x8x128xf32, #tpu.memory_space<vmem>>, vector<1x8x128xf32>
    %10 = vector.shape_cast %9 : vector<1x8x128xf32> to vector<8x128xf32>
    %c4 = arith.constant 4 : index
    %c0_11 = arith.constant 0 : index
    %c0_12 = arith.constant 0 : index
    %11 = vector.load %arg1[%c4, %c0_11, %c0_12] : memref<12x8x128xf32, #tpu.memory_space<vmem>>, vector<1x8x128xf32>
    %12 = vector.shape_cast %11 : vector<1x8x128xf32> to vector<8x128xf32>
    %c5 = arith.constant 5 : index
    %c0_13 = arith.constant 0 : index
    %c0_14 = arith.constant 0 : index
    %13 = vector.load %arg1[%c5, %c0_13, %c0_14] : memref<12x8x128xf32, #tpu.memory_space<vmem>>, vector<1x8x128xf32>
    %14 = vector.shape_cast %13 : vector<1x8x128xf32> to vector<8x128xf32>
    %c6 = arith.constant 6 : index
    %c0_15 = arith.constant 0 : index
    %c0_16 = arith.constant 0 : index
    %15 = vector.load %arg1[%c6, %c0_15, %c0_16] : memref<12x8x128xf32, #tpu.memory_space<vmem>>, vector<1x8x128xf32>
    %16 = vector.shape_cast %15 : vector<1x8x128xf32> to vector<8x128xf32>
    %c7 = arith.constant 7 : index
    %c0_17 = arith.constant 0 : index
    %c0_18 = arith.constant 0 : index
    %17 = vector.load %arg1[%c7, %c0_17, %c0_18] : memref<12x8x128xf32, #tpu.memory_space<vmem>>, vector<1x8x128xf32>
    %18 = vector.shape_cast %17 : vector<1x8x128xf32> to vector<8x128xf32>
    %c8 = arith.constant 8 : index
    %c0_19 = arith.constant 0 : index
    %c0_20 = arith.constant 0 : index
    %19 = vector.load %arg1[%c8, %c0_19, %c0_20] : memref<12x8x128xf32, #tpu.memory_space<vmem>>, vector<1x8x128xf32>
    %20 = vector.shape_cast %19 : vector<1x8x128xf32> to vector<8x128xf32>
    %c9 = arith.constant 9 : index
    %c0_21 = arith.constant 0 : index
    %c0_22 = arith.constant 0 : index
    %21 = vector.load %arg1[%c9, %c0_21, %c0_22] : memref<12x8x128xf32, #tpu.memory_space<vmem>>, vector<1x8x128xf32>
    %22 = vector.shape_cast %21 : vector<1x8x128xf32> to vector<8x128xf32>
    %c10 = arith.constant 10 : index
    %c0_23 = arith.constant 0 : index
    %c0_24 = arith.constant 0 : index
    %23 = vector.load %arg1[%c10, %c0_23, %c0_24] : memref<12x8x128xf32, #tpu.memory_space<vmem>>, vector<1x8x128xf32>
    %24 = vector.shape_cast %23 : vector<1x8x128xf32> to vector<8x128xf32>
    %c11 = arith.constant 11 : index
    %c0_25 = arith.constant 0 : index
    %c0_26 = arith.constant 0 : index
    %25 = vector.load %arg1[%c11, %c0_25, %c0_26] : memref<12x8x128xf32, #tpu.memory_space<vmem>>, vector<1x8x128xf32>
    %26 = vector.shape_cast %25 : vector<1x8x128xf32> to vector<8x128xf32>
    %cst_27 = arith.constant 1.000000e-03 : f32
    %27 = vector.broadcast %cst_27 : f32 to vector<8x128xf32>
    %28 = arith.addf %4, %27 : vector<8x128xf32>
    %cst_28 = arith.constant 0.000000e+00 : f32
    %29 = vector.broadcast %cst_28 : f32 to vector<8x128xf32>
    %30 = arith.maximumf %6, %29 : vector<8x128xf32>
    %31 = vector.broadcast %cst_28 : f32 to vector<8x128xf32>
    %32 = arith.subf %6, %31 : vector<8x128xf32>
    %33 = arith.cmpf one, %32, %32 : vector<8x128xf32>
    %34 = vector.broadcast %cst_28 : f32 to vector<8x128xf32>
    %35 = arith.addf %6, %34 : vector<8x128xf32>
    %36 = math.absf %32 : vector<8x128xf32>
    %cst_29 = arith.constant 0.000000e+00 : f32
    %37 = vector.broadcast %cst_29 : f32 to vector<8x128xf32>
    %38 = arith.subf %37, %36 : vector<8x128xf32>
    %39 = math.exp %38 : vector<8x128xf32>
    %40 = math.log1p %39 : vector<8x128xf32>
    %41 = arith.addf %30, %40 : vector<8x128xf32>
    %42 = arith.select %33, %35, %41 : vector<8x128xi1>, vector<8x128xf32>
    %43 = arith.addf %28, %42 : vector<8x128xf32>
    %cst_30 = arith.constant 1.000000e-03 : f32
    %44 = vector.broadcast %cst_30 : f32 to vector<8x128xf32>
    %45 = arith.addf %16, %44 : vector<8x128xf32>
    %cst_31 = arith.constant 0.000000e+00 : f32
    %46 = vector.broadcast %cst_31 : f32 to vector<8x128xf32>
    %47 = arith.maximumf %18, %46 : vector<8x128xf32>
    %48 = vector.broadcast %cst_31 : f32 to vector<8x128xf32>
    %49 = arith.subf %18, %48 : vector<8x128xf32>
    %50 = arith.cmpf one, %49, %49 : vector<8x128xf32>
    %51 = vector.broadcast %cst_31 : f32 to vector<8x128xf32>
    %52 = arith.addf %18, %51 : vector<8x128xf32>
    %53 = math.absf %49 : vector<8x128xf32>
    %cst_32 = arith.constant 0.000000e+00 : f32
    %54 = vector.broadcast %cst_32 : f32 to vector<8x128xf32>
    %55 = arith.subf %54, %53 : vector<8x128xf32>
    %56 = math.exp %55 : vector<8x128xf32>
    %57 = math.log1p %56 : vector<8x128xf32>
    %58 = arith.addf %47, %57 : vector<8x128xf32>
    %59 = arith.select %50, %52, %58 : vector<8x128xi1>, vector<8x128xf32>
    %60 = arith.addf %45, %59 : vector<8x128xf32>
    %cst_33 = arith.constant 1.000000e-03 : f32
    %61 = vector.broadcast %cst_33 : f32 to vector<8x128xf32>
    %62 = arith.addf %43, %61 : vector<8x128xf32>
    %cst_34 = arith.constant 0.000000e+00 : f32
    %63 = vector.broadcast %cst_34 : f32 to vector<8x128xf32>
    %64 = arith.maximumf %8, %63 : vector<8x128xf32>
    %65 = vector.broadcast %cst_34 : f32 to vector<8x128xf32>
    %66 = arith.subf %8, %65 : vector<8x128xf32>
    %67 = arith.cmpf one, %66, %66 : vector<8x128xf32>
    %68 = vector.broadcast %cst_34 : f32 to vector<8x128xf32>
    %69 = arith.addf %8, %68 : vector<8x128xf32>
    %70 = math.absf %66 : vector<8x128xf32>
    %cst_35 = arith.constant 0.000000e+00 : f32
    %71 = vector.broadcast %cst_35 : f32 to vector<8x128xf32>
    %72 = arith.subf %71, %70 : vector<8x128xf32>
    %73 = math.exp %72 : vector<8x128xf32>
    %74 = math.log1p %73 : vector<8x128xf32>
    %75 = arith.addf %64, %74 : vector<8x128xf32>
    %76 = arith.select %67, %69, %75 : vector<8x128xi1>, vector<8x128xf32>
    %77 = arith.addf %62, %76 : vector<8x128xf32>
    %cst_36 = arith.constant 1.000000e-03 : f32
    %78 = vector.broadcast %cst_36 : f32 to vector<8x128xf32>
    %79 = arith.addf %60, %78 : vector<8x128xf32>
    %cst_37 = arith.constant 0.000000e+00 : f32
    %80 = vector.broadcast %cst_37 : f32 to vector<8x128xf32>
    %81 = arith.maximumf %20, %80 : vector<8x128xf32>
    %82 = vector.broadcast %cst_37 : f32 to vector<8x128xf32>
    %83 = arith.subf %20, %82 : vector<8x128xf32>
    %84 = arith.cmpf one, %83, %83 : vector<8x128xf32>
    %85 = vector.broadcast %cst_37 : f32 to vector<8x128xf32>
    %86 = arith.addf %20, %85 : vector<8x128xf32>
    %87 = math.absf %83 : vector<8x128xf32>
    %cst_38 = arith.constant 0.000000e+00 : f32
    %88 = vector.broadcast %cst_38 : f32 to vector<8x128xf32>
    %89 = arith.subf %88, %87 : vector<8x128xf32>
    %90 = math.exp %89 : vector<8x128xf32>
    %91 = math.log1p %90 : vector<8x128xf32>
    %92 = arith.addf %81, %91 : vector<8x128xf32>
    %93 = arith.select %84, %86, %92 : vector<8x128xi1>, vector<8x128xf32>
    %94 = arith.addf %79, %93 : vector<8x128xf32>
    %cst_39 = arith.constant 1.000000e-03 : f32
    %95 = vector.broadcast %cst_39 : f32 to vector<8x128xf32>
    %96 = arith.addf %77, %95 : vector<8x128xf32>
    %cst_40 = arith.constant 0.000000e+00 : f32
    %97 = vector.broadcast %cst_40 : f32 to vector<8x128xf32>
    %98 = arith.maximumf %10, %97 : vector<8x128xf32>
    %99 = vector.broadcast %cst_40 : f32 to vector<8x128xf32>
    %100 = arith.subf %10, %99 : vector<8x128xf32>
    %101 = arith.cmpf one, %100, %100 : vector<8x128xf32>
    %102 = vector.broadcast %cst_40 : f32 to vector<8x128xf32>
    %103 = arith.addf %10, %102 : vector<8x128xf32>
    %104 = math.absf %100 : vector<8x128xf32>
    %cst_41 = arith.constant 0.000000e+00 : f32
    %105 = vector.broadcast %cst_41 : f32 to vector<8x128xf32>
    %106 = arith.subf %105, %104 : vector<8x128xf32>
    %107 = math.exp %106 : vector<8x128xf32>
    %108 = math.log1p %107 : vector<8x128xf32>
    %109 = arith.addf %98, %108 : vector<8x128xf32>
    %110 = arith.select %101, %103, %109 : vector<8x128xi1>, vector<8x128xf32>
    %111 = arith.addf %96, %110 : vector<8x128xf32>
    %cst_42 = arith.constant 1.000000e-03 : f32
    %112 = vector.broadcast %cst_42 : f32 to vector<8x128xf32>
    %113 = arith.addf %94, %112 : vector<8x128xf32>
    %cst_43 = arith.constant 0.000000e+00 : f32
    %114 = vector.broadcast %cst_43 : f32 to vector<8x128xf32>
    %115 = arith.maximumf %22, %114 : vector<8x128xf32>
    %116 = vector.broadcast %cst_43 : f32 to vector<8x128xf32>
    %117 = arith.subf %22, %116 : vector<8x128xf32>
    %118 = arith.cmpf one, %117, %117 : vector<8x128xf32>
    %119 = vector.broadcast %cst_43 : f32 to vector<8x128xf32>
    %120 = arith.addf %22, %119 : vector<8x128xf32>
    %121 = math.absf %117 : vector<8x128xf32>
    %cst_44 = arith.constant 0.000000e+00 : f32
    %122 = vector.broadcast %cst_44 : f32 to vector<8x128xf32>
    %123 = arith.subf %122, %121 : vector<8x128xf32>
    %124 = math.exp %123 : vector<8x128xf32>
    %125 = math.log1p %124 : vector<8x128xf32>
    %126 = arith.addf %115, %125 : vector<8x128xf32>
    %127 = arith.select %118, %120, %126 : vector<8x128xi1>, vector<8x128xf32>
    %128 = arith.addf %113, %127 : vector<8x128xf32>
    %cst_45 = arith.constant 1.000000e-03 : f32
    %129 = vector.broadcast %cst_45 : f32 to vector<8x128xf32>
    %130 = arith.addf %111, %129 : vector<8x128xf32>
    %cst_46 = arith.constant 0.000000e+00 : f32
    %131 = vector.broadcast %cst_46 : f32 to vector<8x128xf32>
    %132 = arith.maximumf %12, %131 : vector<8x128xf32>
    %133 = vector.broadcast %cst_46 : f32 to vector<8x128xf32>
    %134 = arith.subf %12, %133 : vector<8x128xf32>
    %135 = arith.cmpf one, %134, %134 : vector<8x128xf32>
    %136 = vector.broadcast %cst_46 : f32 to vector<8x128xf32>
    %137 = arith.addf %12, %136 : vector<8x128xf32>
    %138 = math.absf %134 : vector<8x128xf32>
    %cst_47 = arith.constant 0.000000e+00 : f32
    %139 = vector.broadcast %cst_47 : f32 to vector<8x128xf32>
    %140 = arith.subf %139, %138 : vector<8x128xf32>
    %141 = math.exp %140 : vector<8x128xf32>
    %142 = math.log1p %141 : vector<8x128xf32>
    %143 = arith.addf %132, %142 : vector<8x128xf32>
    %144 = arith.select %135, %137, %143 : vector<8x128xi1>, vector<8x128xf32>
    %145 = arith.addf %130, %144 : vector<8x128xf32>
    %cst_48 = arith.constant 1.000000e-03 : f32
    %146 = vector.broadcast %cst_48 : f32 to vector<8x128xf32>
    %147 = arith.addf %128, %146 : vector<8x128xf32>
    %cst_49 = arith.constant 0.000000e+00 : f32
    %148 = vector.broadcast %cst_49 : f32 to vector<8x128xf32>
    %149 = arith.maximumf %24, %148 : vector<8x128xf32>
    %150 = vector.broadcast %cst_49 : f32 to vector<8x128xf32>
    %151 = arith.subf %24, %150 : vector<8x128xf32>
    %152 = arith.cmpf one, %151, %151 : vector<8x128xf32>
    %153 = vector.broadcast %cst_49 : f32 to vector<8x128xf32>
    %154 = arith.addf %24, %153 : vector<8x128xf32>
    %155 = math.absf %151 : vector<8x128xf32>
    %cst_50 = arith.constant 0.000000e+00 : f32
    %156 = vector.broadcast %cst_50 : f32 to vector<8x128xf32>
    %157 = arith.subf %156, %155 : vector<8x128xf32>
    %158 = math.exp %157 : vector<8x128xf32>
    %159 = math.log1p %158 : vector<8x128xf32>
    %160 = arith.addf %149, %159 : vector<8x128xf32>
    %161 = arith.select %152, %154, %160 : vector<8x128xi1>, vector<8x128xf32>
    %162 = arith.addf %147, %161 : vector<8x128xf32>
    %cst_51 = arith.constant 1.000000e-03 : f32
    %163 = vector.broadcast %cst_51 : f32 to vector<8x128xf32>
    %164 = arith.addf %145, %163 : vector<8x128xf32>
    %cst_52 = arith.constant 0.000000e+00 : f32
    %165 = vector.broadcast %cst_52 : f32 to vector<8x128xf32>
    %166 = arith.maximumf %14, %165 : vector<8x128xf32>
    %167 = vector.broadcast %cst_52 : f32 to vector<8x128xf32>
    %168 = arith.subf %14, %167 : vector<8x128xf32>
    %169 = arith.cmpf one, %168, %168 : vector<8x128xf32>
    %170 = vector.broadcast %cst_52 : f32 to vector<8x128xf32>
    %171 = arith.addf %14, %170 : vector<8x128xf32>
    %172 = math.absf %168 : vector<8x128xf32>
    %cst_53 = arith.constant 0.000000e+00 : f32
    %173 = vector.broadcast %cst_53 : f32 to vector<8x128xf32>
    %174 = arith.subf %173, %172 : vector<8x128xf32>
    %175 = math.exp %174 : vector<8x128xf32>
    %176 = math.log1p %175 : vector<8x128xf32>
    %177 = arith.addf %166, %176 : vector<8x128xf32>
    %178 = arith.select %169, %171, %177 : vector<8x128xi1>, vector<8x128xf32>
    %179 = arith.addf %164, %178 : vector<8x128xf32>
    %cst_54 = arith.constant 1.000000e-03 : f32
    %180 = vector.broadcast %cst_54 : f32 to vector<8x128xf32>
    %181 = arith.addf %162, %180 : vector<8x128xf32>
    %cst_55 = arith.constant 0.000000e+00 : f32
    %182 = vector.broadcast %cst_55 : f32 to vector<8x128xf32>
    %183 = arith.maximumf %26, %182 : vector<8x128xf32>
    %184 = vector.broadcast %cst_55 : f32 to vector<8x128xf32>
    %185 = arith.subf %26, %184 : vector<8x128xf32>
    %186 = arith.cmpf one, %185, %185 : vector<8x128xf32>
    %187 = vector.broadcast %cst_55 : f32 to vector<8x128xf32>
    %188 = arith.addf %26, %187 : vector<8x128xf32>
    %189 = math.absf %185 : vector<8x128xf32>
    %cst_56 = arith.constant 0.000000e+00 : f32
    %190 = vector.broadcast %cst_56 : f32 to vector<8x128xf32>
    %191 = arith.subf %190, %189 : vector<8x128xf32>
    %192 = math.exp %191 : vector<8x128xf32>
    %193 = math.log1p %192 : vector<8x128xf32>
    %194 = arith.addf %183, %193 : vector<8x128xf32>
    %195 = arith.select %186, %188, %194 : vector<8x128xi1>, vector<8x128xf32>
    %196 = arith.addf %181, %195 : vector<8x128xf32>
    %197 = arith.subf %60, %16 : vector<8x128xf32>
    %198 = arith.subf %43, %4 : vector<8x128xf32>
    %199 = tpu.reciprocal %198 : vector<8x128xf32> -> vector<8x128xf32>
    %200 = arith.mulf %197, %199 : vector<8x128xf32>
    %201 = arith.subf %94, %60 : vector<8x128xf32>
    %202 = arith.subf %77, %43 : vector<8x128xf32>
    %203 = tpu.reciprocal %202 : vector<8x128xf32> -> vector<8x128xf32>
    %204 = arith.mulf %201, %203 : vector<8x128xf32>
    %205 = arith.subf %128, %94 : vector<8x128xf32>
    %206 = arith.subf %111, %77 : vector<8x128xf32>
    %207 = tpu.reciprocal %206 : vector<8x128xf32> -> vector<8x128xf32>
    %208 = arith.mulf %205, %207 : vector<8x128xf32>
    %209 = arith.subf %162, %128 : vector<8x128xf32>
    %210 = arith.subf %145, %111 : vector<8x128xf32>
    %211 = tpu.reciprocal %210 : vector<8x128xf32> -> vector<8x128xf32>
    %212 = arith.mulf %209, %211 : vector<8x128xf32>
    %213 = arith.subf %196, %162 : vector<8x128xf32>
    %214 = arith.subf %179, %145 : vector<8x128xf32>
    %215 = tpu.reciprocal %214 : vector<8x128xf32> -> vector<8x128xf32>
    %216 = arith.mulf %213, %215 : vector<8x128xf32>
    %217 = arith.mulf %200, %204 : vector<8x128xf32>
    %218 = arith.subf %77, %4 : vector<8x128xf32>
    %219 = arith.mulf %217, %218 : vector<8x128xf32>
    %220 = arith.subf %94, %16 : vector<8x128xf32>
    %221 = tpu.reciprocal %220 : vector<8x128xf32> -> vector<8x128xf32>
    %222 = arith.mulf %219, %221 : vector<8x128xf32>
    %223 = arith.mulf %204, %208 : vector<8x128xf32>
    %224 = arith.subf %111, %43 : vector<8x128xf32>
    %225 = arith.mulf %223, %224 : vector<8x128xf32>
    %226 = arith.subf %128, %60 : vector<8x128xf32>
    %227 = tpu.reciprocal %226 : vector<8x128xf32> -> vector<8x128xf32>
    %228 = arith.mulf %225, %227 : vector<8x128xf32>
    %229 = arith.mulf %208, %212 : vector<8x128xf32>
    %230 = arith.subf %145, %77 : vector<8x128xf32>
    %231 = arith.mulf %229, %230 : vector<8x128xf32>
    %232 = arith.subf %162, %94 : vector<8x128xf32>
    %233 = tpu.reciprocal %232 : vector<8x128xf32> -> vector<8x128xf32>
    %234 = arith.mulf %231, %233 : vector<8x128xf32>
    %235 = arith.mulf %212, %216 : vector<8x128xf32>
    %236 = arith.subf %179, %111 : vector<8x128xf32>
    %237 = arith.mulf %235, %236 : vector<8x128xf32>
    %238 = arith.subf %196, %128 : vector<8x128xf32>
    %239 = tpu.reciprocal %238 : vector<8x128xf32> -> vector<8x128xf32>
    %240 = arith.mulf %237, %239 : vector<8x128xf32>
    %c0_i32 = arith.constant 0 : i32
    %241 = vector.broadcast %c0_i32 : i32 to vector<8x128xi32>
    %242 = arith.cmpf ogt, %0, %4 : vector<8x128xf32>
    %243 = arith.extui %242 : vector<8x128xi1> to vector<8x128xi32>
    %244 = arith.addi %241, %243 : vector<8x128xi32>
    %245 = arith.cmpf ogt, %0, %43 : vector<8x128xf32>
    %246 = arith.extui %245 : vector<8x128xi1> to vector<8x128xi32>
    %247 = arith.addi %244, %246 : vector<8x128xi32>
    %248 = arith.cmpf ogt, %0, %77 : vector<8x128xf32>
    %249 = arith.extui %248 : vector<8x128xi1> to vector<8x128xi32>
    %250 = arith.addi %247, %249 : vector<8x128xi32>
    %251 = arith.cmpf ogt, %0, %111 : vector<8x128xf32>
    %252 = arith.extui %251 : vector<8x128xi1> to vector<8x128xi32>
    %253 = arith.addi %250, %252 : vector<8x128xi32>
    %254 = arith.cmpf ogt, %0, %145 : vector<8x128xf32>
    %255 = arith.extui %254 : vector<8x128xi1> to vector<8x128xi32>
    %256 = arith.addi %253, %255 : vector<8x128xi32>
    %257 = arith.cmpf ogt, %0, %179 : vector<8x128xf32>
    %258 = arith.extui %257 : vector<8x128xi1> to vector<8x128xi32>
    %259 = arith.addi %256, %258 : vector<8x128xi32>
    %c0_i32_57 = arith.constant 0 : i32
    %260 = vector.broadcast %c0_i32_57 : i32 to vector<8x128xi32>
    %261 = arith.cmpi eq, %259, %260 : vector<8x128xi32>
    %c6_i32 = arith.constant 6 : i32
    %262 = vector.broadcast %c6_i32 : i32 to vector<8x128xi32>
    %263 = arith.cmpi eq, %259, %262 : vector<8x128xi32>
    %c1_i32 = arith.constant 1 : i32
    %264 = vector.broadcast %c1_i32 : i32 to vector<8x128xi32>
    %265 = arith.subi %259, %264 : vector<8x128xi32>
    %c0_i32_58 = arith.constant 0 : i32
    %c4_i32 = arith.constant 4 : i32
    %266 = vector.broadcast %c0_i32_58 : i32 to vector<8x128xi32>
    %267 = arith.maxsi %266, %265 : vector<8x128xi32>
    %268 = vector.broadcast %c4_i32 : i32 to vector<8x128xi32>
    %269 = arith.minsi %268, %267 : vector<8x128xi32>
    %c1_i32_59 = arith.constant 1 : i32
    %270 = vector.broadcast %c1_i32_59 : i32 to vector<8x128xi32>
    %271 = arith.cmpi eq, %269, %270 : vector<8x128xi32>
    %272 = arith.select %271, %43, %4 : vector<8x128xi1>, vector<8x128xf32>
    %273 = arith.select %271, %77, %43 : vector<8x128xi1>, vector<8x128xf32>
    %274 = arith.select %271, %60, %16 : vector<8x128xi1>, vector<8x128xf32>
    %275 = arith.select %271, %94, %60 : vector<8x128xi1>, vector<8x128xf32>
    %276 = arith.select %271, %222, %2 : vector<8x128xi1>, vector<8x128xf32>
    %277 = arith.select %271, %228, %222 : vector<8x128xi1>, vector<8x128xf32>
    %c2_i32 = arith.constant 2 : i32
    %278 = vector.broadcast %c2_i32 : i32 to vector<8x128xi32>
    %279 = arith.cmpi eq, %269, %278 : vector<8x128xi32>
    %280 = arith.select %279, %77, %272 : vector<8x128xi1>, vector<8x128xf32>
    %281 = arith.select %279, %111, %273 : vector<8x128xi1>, vector<8x128xf32>
    %282 = arith.select %279, %94, %274 : vector<8x128xi1>, vector<8x128xf32>
    %283 = arith.select %279, %128, %275 : vector<8x128xi1>, vector<8x128xf32>
    %284 = arith.select %279, %228, %276 : vector<8x128xi1>, vector<8x128xf32>
    %285 = arith.select %279, %234, %277 : vector<8x128xi1>, vector<8x128xf32>
    %c3_i32 = arith.constant 3 : i32
    %286 = vector.broadcast %c3_i32 : i32 to vector<8x128xi32>
    %287 = arith.cmpi eq, %269, %286 : vector<8x128xi32>
    %288 = arith.select %287, %111, %280 : vector<8x128xi1>, vector<8x128xf32>
    %289 = arith.select %287, %145, %281 : vector<8x128xi1>, vector<8x128xf32>
    %290 = arith.select %287, %128, %282 : vector<8x128xi1>, vector<8x128xf32>
    %291 = arith.select %287, %162, %283 : vector<8x128xi1>, vector<8x128xf32>
    %292 = arith.select %287, %234, %284 : vector<8x128xi1>, vector<8x128xf32>
    %293 = arith.select %287, %240, %285 : vector<8x128xi1>, vector<8x128xf32>
    %c4_i32_60 = arith.constant 4 : i32
    %294 = vector.broadcast %c4_i32_60 : i32 to vector<8x128xi32>
    %295 = arith.cmpi eq, %269, %294 : vector<8x128xi32>
    %296 = arith.select %295, %145, %288 : vector<8x128xi1>, vector<8x128xf32>
    %297 = arith.select %295, %179, %289 : vector<8x128xi1>, vector<8x128xf32>
    %298 = arith.select %295, %162, %290 : vector<8x128xi1>, vector<8x128xf32>
    %299 = arith.select %295, %196, %291 : vector<8x128xi1>, vector<8x128xf32>
    %300 = arith.select %295, %240, %292 : vector<8x128xi1>, vector<8x128xf32>
    %301 = arith.select %295, %2, %293 : vector<8x128xi1>, vector<8x128xf32>
    %302 = arith.subf %297, %296 : vector<8x128xf32>
    %303 = arith.subf %299, %298 : vector<8x128xf32>
    %304 = tpu.reciprocal %302 : vector<8x128xf32> -> vector<8x128xf32>
    %305 = arith.mulf %303, %304 : vector<8x128xf32>
    %306 = arith.subf %0, %296 : vector<8x128xf32>
    %307 = arith.mulf %306, %304 : vector<8x128xf32>
    %cst_61 = arith.constant 1.000000e+00 : f32
    %308 = vector.broadcast %cst_61 : f32 to vector<8x128xf32>
    %309 = arith.subf %308, %307 : vector<8x128xf32>
    %310 = arith.addf %301, %300 : vector<8x128xf32>
    %cst_62 = arith.constant 2.000000e+00 : f32
    %311 = vector.broadcast %cst_62 : f32 to vector<8x128xf32>
    %312 = arith.mulf %311, %305 : vector<8x128xf32>
    %313 = arith.subf %310, %312 : vector<8x128xf32>
    %314 = arith.mulf %305, %307 : vector<8x128xf32>
    %315 = arith.mulf %314, %307 : vector<8x128xf32>
    %316 = arith.mulf %300, %307 : vector<8x128xf32>
    %317 = arith.mulf %316, %309 : vector<8x128xf32>
    %318 = arith.addf %315, %317 : vector<8x128xf32>
    %319 = arith.mulf %303, %318 : vector<8x128xf32>
    %320 = arith.mulf %313, %307 : vector<8x128xf32>
    %321 = arith.mulf %320, %309 : vector<8x128xf32>
    %322 = arith.addf %305, %321 : vector<8x128xf32>
    %323 = tpu.reciprocal %322 : vector<8x128xf32> -> vector<8x128xf32>
    %324 = arith.mulf %319, %323 : vector<8x128xf32>
    %325 = arith.addf %298, %324 : vector<8x128xf32>
    %326 = arith.mulf %300, %0 : vector<8x128xf32>
    %327 = arith.mulf %300, %296 : vector<8x128xf32>
    %328 = arith.subf %298, %327 : vector<8x128xf32>
    %329 = arith.addf %326, %328 : vector<8x128xf32>
    %330 = arith.mulf %301, %0 : vector<8x128xf32>
    %331 = arith.mulf %301, %297 : vector<8x128xf32>
    %332 = arith.subf %299, %331 : vector<8x128xf32>
    %333 = arith.addf %330, %332 : vector<8x128xf32>
    %334 = arith.select %263, %333, %325 : vector<8x128xi1>, vector<8x128xf32>
    %335 = arith.select %261, %329, %334 : vector<8x128xi1>, vector<8x128xf32>
    %336 = arith.mulf %305, %305 : vector<8x128xf32>
    %337 = arith.mulf %301, %307 : vector<8x128xf32>
    %338 = arith.mulf %337, %307 : vector<8x128xf32>
    %cst_63 = arith.constant 2.000000e+00 : f32
    %339 = vector.broadcast %cst_63 : f32 to vector<8x128xf32>
    %340 = arith.mulf %339, %305 : vector<8x128xf32>
    %341 = arith.mulf %340, %307 : vector<8x128xf32>
    %342 = arith.mulf %341, %309 : vector<8x128xf32>
    %343 = arith.addf %338, %342 : vector<8x128xf32>
    %344 = arith.mulf %300, %309 : vector<8x128xf32>
    %345 = arith.mulf %344, %309 : vector<8x128xf32>
    %346 = arith.addf %343, %345 : vector<8x128xf32>
    %347 = arith.mulf %336, %346 : vector<8x128xf32>
    %348 = arith.mulf %347, %323 : vector<8x128xf32>
    %349 = arith.mulf %348, %323 : vector<8x128xf32>
    %350 = arith.select %263, %301, %349 : vector<8x128xi1>, vector<8x128xf32>
    %351 = arith.select %261, %300, %350 : vector<8x128xi1>, vector<8x128xf32>
    %352 = arith.mulf %1, %351 : vector<8x128xf32>
    %cst_64 = arith.constant -5.000000e-01 : f32
    %353 = vector.broadcast %cst_64 : f32 to vector<8x128xf32>
    %354 = arith.mulf %353, %335 : vector<8x128xf32>
    %355 = arith.mulf %354, %335 : vector<8x128xf32>
    %356 = math.exp %355 : vector<8x128xf32>
    %357 = arith.mulf %356, %352 : vector<8x128xf32>
    %cst_65 = arith.constant 0.398942292 : f32
    %358 = vector.broadcast %cst_65 : f32 to vector<8x128xf32>
    %359 = arith.mulf %357, %358 : vector<8x128xf32>
    %c0_66 = arith.constant 0 : index
    %c0_67 = arith.constant 0 : index
    %360 = vector.load %arg3[%c0_66, %c0_67] : memref<8x128xf32, #tpu.memory_space<vmem>>, vector<8x128xf32>
    tpu.vector_store %arg3[%c0_66, %c0_67], %359 {strides = array<i32>} : memref<8x128xf32, #tpu.memory_space<vmem>>, vector<8x128xf32>,
    return
  }
  func.func @transform_0(%arg0: i32) -> (i32, i32, i32) {
    %c0_i32 = arith.constant 0 : i32
    %c0_i32_0 = arith.constant 0 : i32
    %c0_i32_1 = arith.constant 0 : i32
    return %c0_i32, %arg0, %c0_i32_0 : i32, i32, i32
  }
  func.func @transform_1(%arg0: i32) -> (i32, i32) {
    %c0_i32 = arith.constant 0 : i32
    %c0_i32_0 = arith.constant 0 : i32
    return %arg0, %c0_i32 : i32, i32
  }
  func.func @transform_2(%arg0: i32) -> (i32, i32) {
    %c0_i32 = arith.constant 0 : i32
    %c0_i32_0 = arith.constant 0 : i32
    return %arg0, %c0_i32 : i32, i32
  }
}

</mosaic_0001>

<llo_original>
// kernel: tpu_custom_call.1
$region0: #{tpu_custom_call.1}
  #allocation0 [shape = 'u32[]', space=smem, size = 0x4, offset = 0x4, fixed_abs, tag = 'smem constant byte address 0x4 - core index']
  #allocation1 [shape = 'u32[144,128]{1,0:T(1,128)}', space=vmem, size = 0x12000, scoped, tag = 'internal scratch']
  %s0 = inlined_call_operand.hbm [shape: f32[12,16,128], index: 0, kind: input, shape index: {}]
  %s1 = inlined_call_operand.hbm [shape: f32[16,128], index: 1, kind: input, shape index: {}]
  %s2 = inlined_call_operand.hbm [shape: f32[16,128], index: 2, kind: output, shape index: {}]
  %s3 = sld [smem:[#allocation0]]
  $region49: #{tpu_custom_call.1} parent=0
    _
  %s5 = ssub.s32 1, %s3
  %s6 = scalar_select 0, %s5, %s3
  $region1: #{tpu_custom_call.1} parent=0
    #allocation2 [shape = 'u8[98304]{0}', space=vmem, size = 0x18000, scoped, tag = 'input window, operand 0']
    #allocation3 [shape = 's32[2]{0}', space=sflag, size = 0x8, scoped, tag = 'scoped memory for tpu_custom_call.1']
    #allocation4 [shape = 's32[2]{0}', space=sflag, size = 0x8, scoped, tag = 'scoped memory for tpu_custom_call.1']
    #allocation5 [shape = 'u8[8192]{0}', space=vmem, size = 0x2000, scoped, tag = 'input window, operand 1']
    #allocation6 [shape = 's32[2]{0}', space=sflag, size = 0x8, scoped, tag = 'scoped memory for tpu_custom_call.1']
    #allocation7 [shape = 'u8[8192]{0}', space=vmem, size = 0x2000, scoped, tag = 'output window, operand 0']
    %7 = vsyncpa [#allocation3], 0
    %s8 = scalar_lea.sflag [#allocation3], 1
    %9 = vsyncpa %s8, 0
    %10 = vsyncpa [#allocation6], 0
    %s11 = scalar_lea.sflag [#allocation6], 1
    %12 = vsyncpa %s11, 0
    %13 = vsyncpa [#allocation4], 0
    %s14 = scalar_lea.sflag [#allocation4], 1
    %15 = vsyncpa %s14, 0
    loop: start=0, step=1, limit=4
    $region2: #{tpu_custom_call.1} parent=1 // loop_pre_header
      _
    $region3: #{tpu_custom_call.1} parent=1 // loop_header
      %s17 = sphi 0, %s21
      %p18 = scmp.ge.s32.totalorder %s17, 4
      %s27 = sphi 0, %s29
      %s30 = sphi 0, %s27
      %s31 = sphi 0, %s30
      %s47 = sphi 0, %s31
      %s53 = sphi 0, %s55
      %s56 = sphi 0, %s53
      %s57 = sphi 0, %s56
      %s73 = sphi 0, %s57
      %s79 = sphi 0, %s81
      %s82 = sphi 0, %s79
      %s83 = sphi 0, %s82
      %s99 = sphi 0, %s83
    $region4: #{tpu_custom_call.1} parent=1 // loop_header_branch
      %20 = sbr.rel (%p18) target = $region8
    $region5: #{tpu_custom_call.1} parent=1 // loop_body
      %s22 = ssub.s32 %s17, 1
      %s23 = ssub.s32 %s17, 2
      %s24 = sadd.s32 %s17, 1
      %s25 = ssub.s32 %s17, %s24
      %p26 = scmp.eq.s32.totalorder %s25, 0
      %s28 = sadd.s32 %s27, 1
      %s29 = scalar_select %p26, %s27, %s28
      %p32 = pneg %p26
      %p33 = scmp.eq.s32.totalorder %s17, 1
      %p34 = por %p32, %p33
      %p35 = scmp.ne.s32.totalorder %s27, %s30
      %p36 = scmp.eq.s32.totalorder %s17, 0
      %p37 = por %p35, %p36
      %p38 = scmp.ne.s32.totalorder %s27, %s30
      %p39 = scmp.eq.s32.totalorder %s22, 1
      %p40 = por %p38, %p39
      %p41 = scmp.ne.s32.totalorder %s30, %s31
      %p42 = scmp.eq.s32.totalorder %s22, 0
      %p43 = por %p41, %p42
      %p44 = scmp.ne.s32.totalorder %s30, %s31
      %p45 = scmp.eq.s32.totalorder %s23, 1
      %p46 = por %p44, %p45
      %p48 = scmp.ne.s32.totalorder %s31, %s47
      %p49 = scmp.eq.s32.totalorder %s23, 0
      %p50 = por %p48, %p49
      %s51 = ssub.s32 %s17, %s24
      %p52 = scmp.eq.s32.totalorder %s51, 0
      %s54 = sadd.s32 %s53, 1
      %s55 = scalar_select %p52, %s53, %s54
      %p58 = pneg %p52
      %p59 = scmp.eq.s32.totalorder %s17, 1
      %p60 = por %p58, %p59
      %p61 = scmp.ne.s32.totalorder %s53, %s56
      %p62 = scmp.eq.s32.totalorder %s17, 0
      %p63 = por %p61, %p62
      %p64 = scmp.ne.s32.totalorder %s53, %s56
      %p65 = scmp.eq.s32.totalorder %s22, 1
      %p66 = por %p64, %p65
      %p67 = scmp.ne.s32.totalorder %s56, %s57
      %p68 = scmp.eq.s32.totalorder %s22, 0
      %p69 = por %p67, %p68
      %p70 = scmp.ne.s32.totalorder %s56, %s57
      %p71 = scmp.eq.s32.totalorder %s23, 1
      %p72 = por %p70, %p71
      %p74 = scmp.ne.s32.totalorder %s57, %s73
      %p75 = scmp.eq.s32.totalorder %s23, 0
      %p76 = por %p74, %p75
      %s77 = ssub.s32 %s17, %s24
      %p78 = scmp.eq.s32.totalorder %s77, 0
      %s80 = sadd.s32 %s79, 1
      %s81 = scalar_select %p78, %s79, %s80
      %p84 = pneg %p78
      %p85 = scmp.eq.s32.totalorder %s17, 1
      %p86 = por %p84, %p85
      %p87 = scmp.ne.s32.totalorder %s79, %s82
      %p88 = scmp.eq.s32.totalorder %s17, 0
      %p89 = por %p87, %p88
      %p90 = scmp.ne.s32.totalorder %s79, %s82
      %p91 = scmp.eq.s32.totalorder %s22, 1
      %p92 = por %p90, %p91
      %p93 = scmp.ne.s32.totalorder %s82, %s83
      %p94 = scmp.eq.s32.totalorder %s22, 0
      %p95 = por %p93, %p94
      %p96 = scmp.ne.s32.totalorder %s82, %s83
      %p97 = scmp.eq.s32.totalorder %s23, 1
      %p98 = por %p96, %p97
      %p100 = scmp.ne.s32.totalorder %s83, %s99
      %p101 = scmp.eq.s32.totalorder %s23, 0
      %p102 = por %p100, %p101
      %p103 = scmp.le.s32.totalorder 1, %s17
      %p104 = scmp.lt.s32.totalorder %s17, 3
      %p105 = pnand %p103, %p104
      %p106 = pneg %p105
      // Predicated region
      $region9: #{tpu_custom_call.1} parent=5 // pred_check
        _
      $region10: #{tpu_custom_call.1} parent=5 // pred_check_branch
        %108 = sbr.rel (%p105) target = $region12
      $region11: #{tpu_custom_call.1} parent=5 // pred_region
        %s109 = ssub.s32 %s17, 1
      $region12: #{tpu_custom_call.1} parent=5 // pred_fallthru
        _
      %p110 = scmp.lt.s32.totalorder %s17, 2
      // Predicated region
      $region13: #{tpu_custom_call.1} parent=5 // pred_check
        %p111 = pneg %p110
      $region14: #{tpu_custom_call.1} parent=5 // pred_check_branch
        %113 = sbr.rel (%p111) target = $region16
      $region15: #{tpu_custom_call.1} parent=5 // pred_region
        // Predicated region
        $region17: #{tpu_custom_call.1} parent=15 // pred_check
          %p114 = pneg %p37
        $region18: #{tpu_custom_call.1} parent=15 // pred_check_branch
          %116 = sbr.rel (%p114) target = $region20
        $region19: #{tpu_custom_call.1} parent=15 // pred_region
          %s117 = sand.u32 %s27, 1
          %s118 = scalar_lea.sflag [#allocation3], %s117
          %s119 = sand.u32 %s27, 1
          %s120 = smul.addr %s119, 96
          %s121 = scalar_lea.vmem [#allocation2], %s120
          %s123 = ssub.s32 1536, 1536
          %124 = vsyncadd %s118, %s123
          %s125 = smul.addr %s17, 128
          %s126 = scalar_lea.hbm %s0, %s125
          %s127 = sshll.u32 %s121, 4
          %s128 = int_to_ptr.vmem [resolvable:$true] %s127
          %133 = dma.hbm_to_vmem [thread:$0]  %s126, 1536, %s128, %s118, 256, 128, 8
        $region20: #{tpu_custom_call.1} parent=15 // pred_fallthru
          _
        // Predicated region
        $region21: #{tpu_custom_call.1} parent=15 // pred_check
          %p134 = pneg %p63
        $region22: #{tpu_custom_call.1} parent=15 // pred_check_branch
          %136 = sbr.rel (%p134) target = $region24
        $region23: #{tpu_custom_call.1} parent=15 // pred_region
          %s137 = sand.u32 %s53, 1
          %s138 = scalar_lea.sflag [#allocation6], %s137
          %s139 = sand.u32 %s53, 1
          %s140 = smul.addr %s139, 8
          %s141 = scalar_lea.vmem [#allocation5], %s140
          %s143 = ssub.s32 128, 128
          %144 = vsyncadd %s138, %s143
          %s145 = smul.addr %s17, 128
          %s146 = scalar_lea.hbm %s1, %s145
          %s148 = sshll.u32 %s141, 4
          %s149 = int_to_ptr.vmem [resolvable:$true] %s148
          %151 = dma.hbm_to_vmem [thread:$0]  %s146, 128, %s149, %s138
        $region24: #{tpu_custom_call.1} parent=15 // pred_fallthru
          _
      $region16: #{tpu_custom_call.1} parent=5 // pred_fallthru
        _
      %p152 = scmp.le.s32.totalorder 1, %s17
      %p153 = scmp.lt.s32.totalorder %s17, 3
      %p154 = pnand %p152, %p153
      %p155 = pneg %p154
      // Predicated region
      $region25: #{tpu_custom_call.1} parent=5 // pred_check
        _
      $region26: #{tpu_custom_call.1} parent=5 // pred_check_branch
        %157 = sbr.rel (%p154) target = $region28
      $region27: #{tpu_custom_call.1} parent=5 // pred_region
        %s158 = ssub.s32 %s17, 1
        %s159 = sand.u32 %s30, 1
        %s160 = scalar_lea.sflag [#allocation3], %s159
        %s161 = sand.u32 %s30, 1
        %s162 = smul.addr %s161, 96
        %s163 = scalar_lea.vmem [#allocation2], %s162
        // Predicated region
        $region29: #{tpu_custom_call.1} parent=27 // pred_check
          %p164 = pneg %p43
        $region30: #{tpu_custom_call.1} parent=27 // pred_check_branch
          %166 = sbr.rel (%p164) target = $region32
        $region31: #{tpu_custom_call.1} parent=27 // pred_region
          %167 = dma.done %s160, 1536
        $region32: #{tpu_custom_call.1} parent=27 // pred_fallthru
          _
        %s168 = sand.u32 %s56, 1
        %s169 = scalar_lea.sflag [#allocation6], %s168
        %s170 = sand.u32 %s56, 1
        %s171 = smul.addr %s170, 8
        %s172 = scalar_lea.vmem [#allocation5], %s171
        // Predicated region
        $region33: #{tpu_custom_call.1} parent=27 // pred_check
          %p173 = pneg %p69
        $region34: #{tpu_custom_call.1} parent=27 // pred_check_branch
          %175 = sbr.rel (%p173) target = $region36
        $region35: #{tpu_custom_call.1} parent=27 // pred_region
          %176 = dma.done %s169, 128
        $region36: #{tpu_custom_call.1} parent=27 // pred_fallthru
          _
        %s177 = sand.u32 %s30, 1
        %s178 = scalar_lea.sflag [#allocation3], %s177
        %s179 = sand.u32 %s30, 1
        %s180 = smul.addr %s179, 96
        %s181 = scalar_lea.vmem [#allocation2], %s180
        %p182 = pneg %p43
        %p183 = pneg %p40
        %s184 = sand.u32 %s56, 1
        %s185 = scalar_lea.sflag [#allocation6], %s184
        %s186 = sand.u32 %s56, 1
        %s187 = smul.addr %s186, 8
        %s188 = scalar_lea.vmem [#allocation5], %s187
        %p189 = pneg %p69
        %p190 = pneg %p66
        %p191 = pneg %p95
        %p192 = pneg %p92
        %s193 = sand.u32 %s82, 1
        %s194 = scalar_lea.sflag [#allocation4], %s193
        %s195 = sand.u32 %s82, 1
        %s196 = smul.addr %s195, 8
        %s197 = scalar_lea.vmem [#allocation7], %s196
        %v198 = vld [vmem:[%s172] sm:$0xff]
        %v199 = vld [vmem:[%s163] sm:$0xff]
        %s200 = scalar_lea.vmem %s163, 8 [#allocation2]
        %v201 = vld [vmem:[%s200] sm:$0xff]
        %s202 = scalar_lea.vmem %s163, 16 [#allocation2]
        %v203 = vld [vmem:[%s202] sm:$0xff]
        %s204 = scalar_lea.vmem %s163, 24 [#allocation2]
        %v205 = vld [vmem:[%s204] sm:$0xff]
        %s206 = scalar_lea.vmem %s163, 32 [#allocation2]
        %v207 = vld [vmem:[%s206] sm:$0xff]
        %s208 = scalar_lea.vmem %s163, 40 [#allocation2]
        %v209 = vld [vmem:[%s208] sm:$0xff]
        %s210 = scalar_lea.vmem %s163, 48 [#allocation2]
        %v211 = vld [vmem:[%s210] sm:$0xff]
        %s212 = scalar_lea.vmem %s163, 56 [#allocation2]
        %v213 = vld [vmem:[%s212] sm:$0xff]
        %s214 = scalar_lea.vmem %s163, 64 [#allocation2]
        %v215 = vld [vmem:[%s214] sm:$0xff]
        %s216 = scalar_lea.vmem %s163, 72 [#allocation2]
        %v217 = vld [vmem:[%s216] sm:$0xff]
        %s218 = scalar_lea.vmem %s163, 80 [#allocation2]
        %v219 = vld [vmem:[%s218] sm:$0xff]
        %s220 = scalar_lea.vmem %s163, 88 [#allocation2]
        %v221 = vld [vmem:[%s220] sm:$0xff]
        %v222 = vadd.f32 %v199, 0.001
        %v223 = vmax.f32 %v201, 0.0
        %vm224 = vcmp.ne.f32.partialorder %v201, %v201
        %v225 = vadd.f32 %v201, 0.0
        %v226 = vand.u32 2147483647, %v201
        %v227 = vsub.f32 0.0, %v226
        %v228 = vmul.f32 %v227, 1.442695
        %v229 = vpow.pop %v228
        %v230 = vadd.f32 %v229, 1.0
        %v231 = vlog2.pop %v230
        %v232 = vmul.f32 %v231, 0.6931472
        %v233 = vmul.f32 -0.5, %v229
        %v234 = vadd.f32 %v233, 1.0
        %v235 = vmul.f32 %v234, %v229
        %v236 = vand.u32 2147483647, %v229
        %vm237 = vcmp.lt.f32.partialorder %v236, 0.0004427343
        %v238 = vsel %vm237, %v235, %v232
        %v239 = vadd.f32 %v223, %v238
        %v240 = vsel %vm224, %v225, %v239
        %v241 = vadd.f32 %v222, %v240
        %v242 = vadd.f32 %v211, 0.001
        %v243 = vmax.f32 %v213, 0.0
        %vm244 = vcmp.ne.f32.partialorder %v213, %v213
        %v245 = vadd.f32 %v213, 0.0
        %v246 = vand.u32 2147483647, %v213
        %v247 = vsub.f32 0.0, %v246
        %v248 = vmul.f32 %v247, 1.442695
        %v249 = vpow.pop %v248
        %v250 = vadd.f32 %v249, 1.0
        %v251 = vlog2.pop %v250
        %v252 = vmul.f32 %v251, 0.6931472
        %v253 = vmul.f32 -0.5, %v249
        %v254 = vadd.f32 %v253, 1.0
        %v255 = vmul.f32 %v254, %v249
        %v256 = vand.u32 2147483647, %v249
        %vm257 = vcmp.lt.f32.partialorder %v256, 0.0004427343
        %v258 = vsel %vm257, %v255, %v252
        %v259 = vadd.f32 %v243, %v258
        %v260 = vsel %vm244, %v245, %v259
        %v261 = vadd.f32 %v242, %v260
        %v262 = vadd.f32 %v241, 0.001
        %v263 = vmax.f32 %v203, 0.0
        %vm264 = vcmp.ne.f32.partialorder %v203, %v203
        %v265 = vadd.f32 %v203, 0.0
        %v266 = vand.u32 2147483647, %v203
        %v267 = vsub.f32 0.0, %v266
        %v268 = vmul.f32 %v267, 1.442695
        %v269 = vpow.pop %v268
        %v270 = vadd.f32 %v269, 1.0
        %v271 = vlog2.pop %v270
        %v272 = vmul.f32 %v271, 0.6931472
        %v273 = vmul.f32 -0.5, %v269
        %v274 = vadd.f32 %v273, 1.0
        %v275 = vmul.f32 %v274, %v269
        %v276 = vand.u32 2147483647, %v269
        %vm277 = vcmp.lt.f32.partialorder %v276, 0.0004427343
        %v278 = vsel %vm277, %v275, %v272
        %v279 = vadd.f32 %v263, %v278
        %v280 = vsel %vm264, %v265, %v279
        %v281 = vadd.f32 %v262, %v280
        %v282 = vadd.f32 %v261, 0.001
        %v283 = vmax.f32 %v215, 0.0
        %vm284 = vcmp.ne.f32.partialorder %v215, %v215
        %v285 = vadd.f32 %v215, 0.0
        %v286 = vand.u32 2147483647, %v215
        %v287 = vsub.f32 0.0, %v286
        %v288 = vmul.f32 %v287, 1.442695
        %v289 = vpow.pop %v288
        %v290 = vadd.f32 %v289, 1.0
        %v291 = vlog2.pop %v290
        %v292 = vmul.f32 %v291, 0.6931472
        %v293 = vmul.f32 -0.5, %v289
        %v294 = vadd.f32 %v293, 1.0
        %v295 = vmul.f32 %v294, %v289
        %v296 = vand.u32 2147483647, %v289
        %vm297 = vcmp.lt.f32.partialorder %v296, 0.0004427343
        %v298 = vsel %vm297, %v295, %v292
        %v299 = vadd.f32 %v283, %v298
        %v300 = vsel %vm284, %v285, %v299
        %v301 = vadd.f32 %v282, %v300
        %v302 = vadd.f32 %v281, 0.001
        %v303 = vmax.f32 %v205, 0.0
        %vm304 = vcmp.ne.f32.partialorder %v205, %v205
        %v305 = vadd.f32 %v205, 0.0
        %v306 = vand.u32 2147483647, %v205
        %v307 = vsub.f32 0.0, %v306
        %v308 = vmul.f32 %v307, 1.442695
        %v309 = vpow.pop %v308
        %v310 = vadd.f32 %v309, 1.0
        %v311 = vlog2.pop %v310
        %v312 = vmul.f32 %v311, 0.6931472
        %v313 = vmul.f32 -0.5, %v309
        %v314 = vadd.f32 %v313, 1.0
        %v315 = vmul.f32 %v314, %v309
        %v316 = vand.u32 2147483647, %v309
        %vm317 = vcmp.lt.f32.partialorder %v316, 0.0004427343
        %v318 = vsel %vm317, %v315, %v312
        %v319 = vadd.f32 %v303, %v318
        %v320 = vsel %vm304, %v305, %v319
        %v321 = vadd.f32 %v302, %v320
        %v322 = vadd.f32 %v301, 0.001
        %v323 = vmax.f32 %v217, 0.0
        %vm324 = vcmp.ne.f32.partialorder %v217, %v217
        %v325 = vadd.f32 %v217, 0.0
        %v326 = vand.u32 2147483647, %v217
        %v327 = vsub.f32 0.0, %v326
        %v328 = vmul.f32 %v327, 1.442695
        %v329 = vpow.pop %v328
        %v330 = vadd.f32 %v329, 1.0
        %v331 = vlog2.pop %v330
        %v332 = vmul.f32 %v331, 0.6931472
        %v333 = vmul.f32 -0.5, %v329
        %v334 = vadd.f32 %v333, 1.0
        %v335 = vmul.f32 %v334, %v329
        %v336 = vand.u32 2147483647, %v329
        %vm337 = vcmp.lt.f32.partialorder %v336, 0.0004427343
        %v338 = vsel %vm337, %v335, %v332
        %v339 = vadd.f32 %v323, %v338
        %v340 = vsel %vm324, %v325, %v339
        %v341 = vadd.f32 %v322, %v340
        %v342 = vadd.f32 %v321, 0.001
        %v343 = vmax.f32 %v207, 0.0
        %vm344 = vcmp.ne.f32.partialorder %v207, %v207
        %v345 = vadd.f32 %v207, 0.0
        %v346 = vand.u32 2147483647, %v207
        %v347 = vsub.f32 0.0, %v346
        %v348 = vmul.f32 %v347, 1.442695
        %v349 = vpow.pop %v348
        %v350 = vadd.f32 %v349, 1.0
        %v351 = vlog2.pop %v350
        %v352 = vmul.f32 %v351, 0.6931472
        %v353 = vmul.f32 -0.5, %v349
        %v354 = vadd.f32 %v353, 1.0
        %v355 = vmul.f32 %v354, %v349
        %v356 = vand.u32 2147483647, %v349
        %vm357 = vcmp.lt.f32.partialorder %v356, 0.0004427343
        %v358 = vsel %vm357, %v355, %v352
        %v359 = vadd.f32 %v343, %v358
        %v360 = vsel %vm344, %v345, %v359
        %v361 = vadd.f32 %v342, %v360
        %v362 = vadd.f32 %v341, 0.001
        %v363 = vmax.f32 %v219, 0.0
        %vm364 = vcmp.ne.f32.partialorder %v219, %v219
        %v365 = vadd.f32 %v219, 0.0
        %v366 = vand.u32 2147483647, %v219
        %v367 = vsub.f32 0.0, %v366
        %v368 = vmul.f32 %v367, 1.442695
        %v369 = vpow.pop %v368
        %v370 = vadd.f32 %v369, 1.0
        %v371 = vlog2.pop %v370
        %v372 = vmul.f32 %v371, 0.6931472
        %v373 = vmul.f32 -0.5, %v369
        %v374 = vadd.f32 %v373, 1.0
        %v375 = vmul.f32 %v374, %v369
        %v376 = vand.u32 2147483647, %v369
        %vm377 = vcmp.lt.f32.partialorder %v376, 0.0004427343
        %v378 = vsel %vm377, %v375, %v372
        %v379 = vadd.f32 %v363, %v378
        %v380 = vsel %vm364, %v365, %v379
        %v381 = vadd.f32 %v362, %v380
        %v382 = vadd.f32 %v361, 0.001
        %v383 = vmax.f32 %v209, 0.0
        %vm384 = vcmp.ne.f32.partialorder %v209, %v209
        %v385 = vadd.f32 %v209, 0.0
        %v386 = vand.u32 2147483647, %v209
        %v387 = vsub.f32 0.0, %v386
        %v388 = vmul.f32 %v387, 1.442695
        %v389 = vpow.pop %v388
        %v390 = vadd.f32 %v389, 1.0
        %v391 = vlog2.pop %v390
        %v392 = vmul.f32 %v391, 0.6931472
        %v393 = vmul.f32 -0.5, %v389
        %v394 = vadd.f32 %v393, 1.0
        %v395 = vmul.f32 %v394, %v389
        %v396 = vand.u32 2147483647, %v389
        %vm397 = vcmp.lt.f32.partialorder %v396, 0.0004427343
        %v398 = vsel %vm397, %v395, %v392
        %v399 = vadd.f32 %v383, %v398
        %v400 = vsel %vm384, %v385, %v399
        %v401 = vadd.f32 %v382, %v400
        %v402 = vadd.f32 %v381, 0.001
        %v403 = vmax.f32 %v221, 0.0
        %vm404 = vcmp.ne.f32.partialorder %v221, %v221
        %v405 = vadd.f32 %v221, 0.0
        %v406 = vand.u32 2147483647, %v221
        %v407 = vsub.f32 0.0, %v406
        %v408 = vmul.f32 %v407, 1.442695
        %v409 = vpow.pop %v408
        %v410 = vadd.f32 %v409, 1.0
        %v411 = vlog2.pop %v410
        %v412 = vmul.f32 %v411, 0.6931472
        %v413 = vmul.f32 -0.5, %v409
        %v414 = vadd.f32 %v413, 1.0
        %v415 = vmul.f32 %v414, %v409
        %v416 = vand.u32 2147483647, %v409
        %vm417 = vcmp.lt.f32.partialorder %v416, 0.0004427343
        %v418 = vsel %vm417, %v415, %v412
        %v419 = vadd.f32 %v403, %v418
        %v420 = vsel %vm404, %v405, %v419
        %v421 = vadd.f32 %v402, %v420
        %v422 = vsub.f32 %v261, %v211
        %v423 = vsub.f32 %v241, %v199
        %v424 = vrcp.pop %v423
        %v425 = vmul.f32 %v422, %v424
        %v426 = vsub.f32 %v301, %v261
        %v427 = vsub.f32 %v281, %v241
        %v428 = vrcp.pop %v427
        %v429 = vmul.f32 %v426, %v428
        %v430 = vsub.f32 %v341, %v301
        %v431 = vsub.f32 %v321, %v281
        %v432 = vrcp.pop %v431
        %v433 = vmul.f32 %v430, %v432
        %v434 = vsub.f32 %v381, %v341
        %v435 = vsub.f32 %v361, %v321
        %v436 = vrcp.pop %v435
        %v437 = vmul.f32 %v434, %v436
        %v438 = vsub.f32 %v421, %v381
        %v439 = vsub.f32 %v401, %v361
        %v440 = vrcp.pop %v439
        %v441 = vmul.f32 %v438, %v440
        %v442 = vmul.f32 %v425, %v429
        %v443 = vsub.f32 %v281, %v199
        %v444 = vmul.f32 %v442, %v443
        %v445 = vsub.f32 %v301, %v211
        %v446 = vrcp.pop %v445
        %v447 = vmul.f32 %v444, %v446
        %v448 = vmul.f32 %v429, %v433
        %v449 = vsub.f32 %v321, %v241
        %v450 = vmul.f32 %v448, %v449
        %v451 = vsub.f32 %v341, %v261
        %v452 = vrcp.pop %v451
        %v453 = vmul.f32 %v450, %v452
        %v454 = vmul.f32 %v433, %v437
        %v455 = vsub.f32 %v361, %v281
        %v456 = vmul.f32 %v454, %v455
        %v457 = vsub.f32 %v381, %v301
        %v458 = vrcp.pop %v457
        %v459 = vmul.f32 %v456, %v458
        %v460 = vmul.f32 %v437, %v441
        %v461 = vsub.f32 %v401, %v321
        %v462 = vmul.f32 %v460, %v461
        %v463 = vsub.f32 %v421, %v341
        %v464 = vrcp.pop %v463
        %v465 = vmul.f32 %v462, %v464
        %vm466 = vcmp.gt.f32.partialorder %v198, %v199
        %v467 = vsel %vm466, 1, 0
        %vm468 = vcmp.gt.f32.partialorder %v198, %v241
        %v469 = vsel %vm468, 1, 0
        %v470 = vadd.s32 %v467, %v469
        %vm471 = vcmp.gt.f32.partialorder %v198, %v281
        %v472 = vsel %vm471, 1, 0
        %v473 = vadd.s32 %v470, %v472
        %vm474 = vcmp.gt.f32.partialorder %v198, %v321
        %v475 = vsel %vm474, 1, 0
        %v476 = vadd.s32 %v473, %v475
        %vm477 = vcmp.gt.f32.partialorder %v198, %v361
        %v478 = vsel %vm477, 1, 0
        %v479 = vadd.s32 %v476, %v478
        %vm480 = vcmp.gt.f32.partialorder %v198, %v401
        %v481 = vsel %vm480, 1, 0
        %v482 = vadd.s32 %v479, %v481
        %vm483 = vcmp.eq.s32.totalorder %v482, 0
        %vm484 = vcmp.eq.s32.totalorder %v482, 6
        %v485 = vsub.s32 %v482, 1
        %vm486 = vcmp.gt.s32.totalorder %v485, 0
        %v487 = vsel %vm486, %v485, 0
        %vm488 = vcmp.lt.s32.totalorder %v487, 4
        %v489 = vsel %vm488, %v487, 4
        %vm490 = vcmp.eq.s32.totalorder %v489, 1
        %v491 = vsel %vm490, %v241, %v199
        %v492 = vsel %vm490, %v281, %v241
        %v493 = vsel %vm490, %v261, %v211
        %v494 = vsel %vm490, %v301, %v261
        %v495 = vsel %vm490, %v447, 1.0
        %v496 = vsel %vm490, %v453, %v447
        %vm497 = vcmp.eq.s32.totalorder %v489, 2
        %v498 = vsel %vm497, %v281, %v491
        %v499 = vsel %vm497, %v321, %v492
        %v500 = vsel %vm497, %v301, %v493
        %v501 = vsel %vm497, %v341, %v494
        %v502 = vsel %vm497, %v453, %v495
        %v503 = vsel %vm497, %v459, %v496
        %vm504 = vcmp.eq.s32.totalorder %v489, 3
        %v505 = vsel %vm504, %v321, %v498
        %v506 = vsel %vm504, %v361, %v499
        %v507 = vsel %vm504, %v341, %v500
        %v508 = vsel %vm504, %v381, %v501
        %v509 = vsel %vm504, %v459, %v502
        %v510 = vsel %vm504, %v465, %v503
        %vm511 = vcmp.eq.s32.totalorder %v489, 4
        %v512 = vsel %vm511, %v361, %v505
        %v513 = vsel %vm511, %v401, %v506
        %v514 = vsel %vm511, %v381, %v507
        %v515 = vsel %vm511, %v421, %v508
        %v516 = vsel %vm511, %v465, %v509
        %v517 = vsel %vm511, 1.0, %v510
        %v518 = vsub.f32 %v513, %v512
        %v519 = vsub.f32 %v515, %v514
        %v520 = vrcp.pop %v518
        %v521 = vmul.f32 %v519, %v520
        %v522 = vsub.f32 %v198, %v512
        %v523 = vmul.f32 %v522, %v520
        %v524 = vsub.f32 1.0, %v523
        %v525 = vadd.f32 %v517, %v516
        %v526 = vmul.f32 %v521, 2.0
        %v527 = vsub.f32 %v525, %v526
        %v528 = vmul.f32 %v521, %v523
        %v529 = vmul.f32 %v528, %v523
        %v530 = vmul.f32 %v516, %v523
        %v531 = vmul.f32 %v530, %v524
        %v532 = vadd.f32 %v529, %v531
        %v533 = vmul.f32 %v519, %v532
        %v534 = vmul.f32 %v527, %v523
        %v535 = vmul.f32 %v534, %v524
        %v536 = vadd.f32 %v521, %v535
        %v537 = vrcp.pop %v536
        %v538 = vmul.f32 %v533, %v537
        %v539 = vadd.f32 %v514, %v538
        %v540 = vmul.f32 %v516, %v198
        %v541 = vmul.f32 %v516, %v512
        %v542 = vsub.f32 %v514, %v541
        %v543 = vadd.f32 %v540, %v542
        %v544 = vmul.f32 %v517, %v198
        %v545 = vmul.f32 %v517, %v513
        %v546 = vsub.f32 %v515, %v545
        %v547 = vadd.f32 %v544, %v546
        %v548 = vsel %vm484, %v547, %v539
        %v549 = vsel %vm483, %v543, %v548
        %v550 = vmul.f32 %v521, %v521
        %v551 = vmul.f32 %v517, %v523
        %v552 = vmul.f32 %v551, %v523
        %v553 = vmul.f32 %v526, %v523
        %v554 = vmul.f32 %v553, %v524
        %v555 = vadd.f32 %v552, %v554
        %v556 = vmul.f32 %v516, %v524
        %v557 = vmul.f32 %v556, %v524
        %v558 = vadd.f32 %v555, %v557
        %v559 = vmul.f32 %v550, %v558
        %v560 = vmul.f32 %v559, %v537
        %v561 = vmul.f32 %v560, %v537
        %v562 = vsel %vm484, %v517, %v561
        %v563 = vsel %vm483, %v516, %v562
        %v564 = vmul.f32 %v549, -0.5
        %v565 = vmul.f32 %v564, %v549
        %v566 = vmul.f32 %v565, 1.442695
        %v567 = vpow.pop %v566
        %v568 = vmul.f32 %v567, %v563
        %v569 = vmul.f32 %v568, 0.3989423
        %570 = vst [vmem:[%s197] sm:$0xff] %v569
        %s571 = sand.u32 %s82, 1
        %s572 = scalar_lea.sflag [#allocation4], %s571
        %s573 = sand.u32 %s82, 1
        %s574 = smul.addr %s573, 8
        %s575 = scalar_lea.vmem [#allocation7], %s574
        // Predicated region
        $region37: #{tpu_custom_call.1} parent=27 // pred_check
          %p576 = pneg %p92
        $region38: #{tpu_custom_call.1} parent=27 // pred_check_branch
          %578 = sbr.rel (%p576) target = $region40
        $region39: #{tpu_custom_call.1} parent=27 // pred_region
          %s580 = ssub.s32 128, 128
          %581 = vsyncadd %s572, %s580
          %s582 = smul.addr %s22, 128
          %s583 = scalar_lea.hbm %s2, %s582
          %s585 = sshll.u32 %s575, 4
          %s586 = int_to_ptr.vmem [resolvable:$true] %s585
          %588 = dma.vmem_to_hbm [thread:$0]  %s586, 128, %s583, %s572
        $region40: #{tpu_custom_call.1} parent=27 // pred_fallthru
          _
      $region28: #{tpu_custom_call.1} parent=5 // pred_fallthru
        _
      %p589 = scmp.le.s32.totalorder 2, %s17
      // Predicated region
      $region41: #{tpu_custom_call.1} parent=5 // pred_check
        %p590 = pneg %p589
      $region42: #{tpu_custom_call.1} parent=5 // pred_check_branch
        %592 = sbr.rel (%p590) target = $region44
      $region43: #{tpu_custom_call.1} parent=5 // pred_region
        %s593 = ssub.s32 %s17, 2
        // Predicated region
        $region45: #{tpu_custom_call.1} parent=43 // pred_check
          %p594 = pneg %p98
        $region46: #{tpu_custom_call.1} parent=43 // pred_check_branch
          %596 = sbr.rel (%p594) target = $region48
        $region47: #{tpu_custom_call.1} parent=43 // pred_region
          %s597 = sand.u32 %s83, 1
          %s598 = scalar_lea.sflag [#allocation4], %s597
          %s599 = sand.u32 %s83, 1
          %s600 = smul.addr %s599, 8
          %s601 = scalar_lea.vmem [#allocation7], %s600
          %602 = dma.done %s598, 128
        $region48: #{tpu_custom_call.1} parent=43 // pred_fallthru
          _
      $region44: #{tpu_custom_call.1} parent=5 // pred_fallthru
        _
    $region6: #{tpu_custom_call.1} parent=1 // loop_footer
      %s21 = sadd.s32 1, %s17
    $region7: #{tpu_custom_call.1} parent=1 // loop_footer_branch
      %16 = sbr.rel target = $region3
    $region8: #{tpu_custom_call.1} parent=1 // loop_exit
      _
    %603 = vsyncpa [#allocation3], 1
    %s604 = scalar_lea.sflag [#allocation3], 1
    %605 = vsyncpa %s604, 1
    %606 = vsyncpa [#allocation6], 1
    %s607 = scalar_lea.sflag [#allocation6], 1
    %608 = vsyncpa %s607, 1
    %609 = vsyncpa [#allocation4], 1
    %s610 = scalar_lea.sflag [#allocation4], 1
    %611 = vsyncpa %s610, 1

</llo_original>
